<compile_context>
chip_gen: v5e
topology: v5e:2x2
jax: 0.10.0
libtpu: 0.0.40
codegen_flags: <defaults>
</compile_context>

<pallas_src>
import math
import functools

import jax
import jax.numpy as jnp
from jax.experimental import pallas as pl
from jax.experimental.pallas import tpu as pltpu


def _cdiv(a: int, b: int) -> int:
    return -(-a // b)


def _round_up(a: int, b: int) -> int:
    return _cdiv(a, b) * b


def _rel_pos_kernel(a_ref, b_ref, c_ref, s_ref, o_ref, *, groups: int, alpha: int):
    """Fill one (groups*alpha, d_model) row-tile of the relative-PE table.

    a_ref, b_ref : (groups, 1, d)  per-"a"-group factors for this tile
                   a = even_lane ? sin(Ra*f) : cos(Ra*f)
                   b = even_lane ? -cos(Ra*f) : sin(Ra*f)
    c_ref, s_ref : (alpha, d)      cos(b*f), sin(b*f) for b in [0, alpha)
    Row (t*alpha + bb) of the tile is a[t] * c[bb] + b[t] * s[bb]:
    pure VPU work (2 mul + 1 add per element), no transcendentals.
    """
    cv = c_ref[...]  # (alpha, d)
    sv = s_ref[...]  # (alpha, d)
    for t in range(groups):  # static unroll (groups is small, <= 64)
        a_row = a_ref[t]     # (1, d), broadcast along sublanes
        b_row = b_ref[t]     # (1, d)
        vals = a_row * cv + b_row * sv               # (alpha, d) f32
        o_ref[t * alpha:(t + 1) * alpha, :] = vals.astype(o_ref.dtype)


def relative_positional_encoding(x: jax.Array, d_model: int = 512) -> jax.Array:
    """JAX/Pallas equivalent of RelativePositionalEncoding.forward.

    Args:
        x: [B, T, C] input (only T and dtype are used, exactly like the
           PyTorch module which only reads x.size(1) / x.dtype).
        d_model: embedding dimension of the positional table (must be even).

    Returns:
        pos_emb: [1, 2T-1, d_model] with dtype of x.
    """
    assert d_model % 2 == 0, "d_model must be even (same assumption as PyTorch module)"
    seq_len = int(x.shape[1])
    L = 2 * seq_len - 1
    itemsize = jnp.dtype(x.dtype).itemsize

    # ---- row factorization g = alpha*a + b -------------------------------
    alpha = min(128, _round_up(L, 8))          # multiple of 8 (sublane-aligned)
    nA = _cdiv(L, alpha)                       # number of alpha-row groups

    # Tile sizing: byte-budget the double-buffered output block (fits v5e's
    # 16 MiB scoped default), cap the static unroll, and keep >= 2 balanced
    # grid steps when there is enough work (v7x megacore).
    out_budget = 8 * 1024 * 1024
    max_rows = max(alpha, out_budget // (2 * d_model * itemsize))
    max_groups = max(1, max_rows // alpha)
    if nA >= 2:
        groups = max(1, min(max_groups, 64, _cdiv(nA, 2)))
    else:
        groups = 1
    nsteps = _cdiv(nA, groups)
    groups = _cdiv(nA, nsteps)                 # rebalance tiles across steps
    tile_rows = groups * alpha
    nA_pad = nsteps * groups

    # ---- tiny factor tables (the only transcendentals, done by XLA) ------
    col = jnp.arange(d_model)
    k = (col // 2).astype(jnp.float32)
    freq = jnp.exp(k * (-2.0 * math.log(10000.0) / d_model))        # (d,)
    even = (col % 2) == 0                                           # (d,) bool

    ra = (seq_len - 1) - alpha * jnp.arange(nA_pad, dtype=jnp.float32)   # (nA_pad,)
    ua = ra[:, None, None] * freq[None, None, :]                    # (nA_pad, 1, d)
    sin_a = jnp.sin(ua)
    cos_a = jnp.cos(ua)
    a_fac = jnp.where(even, sin_a, cos_a)                           # (nA_pad, 1, d)
    b_fac = jnp.where(even, -cos_a, sin_a)                          # (nA_pad, 1, d)

    vb = jnp.arange(alpha, dtype=jnp.float32)[:, None] * freq[None, :]   # (alpha, d)
    c_fac = jnp.cos(vb)                                             # (alpha, d)
    s_fac = jnp.sin(vb)                                             # (alpha, d)

    kernel = functools.partial(_rel_pos_kernel, groups=groups, alpha=alpha)

    table = pl.pallas_call(
        kernel,
        out_shape=jax.ShapeDtypeStruct((L, d_model), x.dtype),
        grid=(nsteps,),
        in_specs=[
            pl.BlockSpec((groups, 1, d_model), lambda i: (i, 0, 0)),   # a_fac
            pl.BlockSpec((groups, 1, d_model), lambda i: (i, 0, 0)),   # b_fac
            pl.BlockSpec((alpha, d_model), lambda i: (0, 0)),          # cos(b*f)
            pl.BlockSpec((alpha, d_model), lambda i: (0, 0)),          # sin(b*f)
        ],
        out_specs=pl.BlockSpec((tile_rows, d_model), lambda i: (i, 0)),
        compiler_params=pltpu.CompilerParams(
            dimension_semantics=("parallel",),
            vmem_limit_bytes=32 * 1024 * 1024,
        ),
        cost_estimate=pl.CostEstimate(
            flops=3 * L * d_model,
            transcendentals=0,
            bytes_accessed=L * d_model * itemsize
            + (2 * nA_pad + 2 * alpha) * d_model * 4,
        ),
    )(a_fac, b_fac, c_fac, s_fac)
    return table[None, :, :]  # (1, 2T-1, d_model)


def _reference(seq_len: int, d_model: int, dtype=jnp.float32) -> jax.Array:
    """Pure-JAX reference reproducing the PyTorch extend_pe + slice."""
    pos = jnp.arange(seq_len, dtype=jnp.float32)[:, None]  # (T, 1)
    div_term = jnp.exp(
        jnp.arange(0, d_model, 2, dtype=jnp.float32) * -(math.log(10000.0) / d_model)
    )  # (d_model/2,)

    def interleave(s, c):
        out = jnp.zeros((s.shape[0], d_model), dtype=jnp.float32)
        out = out.at[:, 0::2].set(s)
        out = out.at[:, 1::2].set(c)
        return out

    pe_positive = interleave(jnp.sin(pos * div_term), jnp.cos(pos * div_term))
    pe_negative = interleave(jnp.sin(-pos * div_term), jnp.cos(-pos * div_term))
    pe_positive = jnp.flip(pe_positive, axis=0)[None]          # (1, T, d)
    pe_negative = pe_negative[1:][None]                         # (1, T-1, d)
    pe = jnp.concatenate([pe_positive, pe_negative], axis=1)    # (1, 2T-1, d)
    center = pe.shape[1] // 2
    pos_emb = pe[:, center - seq_len + 1 : center + seq_len]
    return pos_emb.astype(dtype)


if __name__ == "__main__":
    key = jax.random.PRNGKey(0)

    # Primary small test (shapes consistent with the module's forward).
    B, T, C = 2, 8, 32
    d_model = 32
    x = jax.random.normal(key, (B, T, C), dtype=jnp.float32)
    pos_emb = jax.block_until_ready(relative_positional_encoding(x, d_model=d_model))
    ref = _reference(T, d_model, dtype=x.dtype)
    assert pos_emb.shape == (1, 2 * T - 1, d_model), pos_emb.shape
    assert pos_emb.dtype == x.dtype
    assert jnp.allclose(pos_emb, ref, atol=1e-5, rtol=1e-5), (
        float(jnp.max(jnp.abs(pos_emb - ref)))
    )

    # Secondary check exercising the multi-step grid + ragged last tile path.
    T2, d2 = 200, 64
    x2 = jax.random.normal(key, (1, T2, d2), dtype=jnp.float32)
    pos2 = jax.block_until_ready(relative_positional_encoding(x2, d_model=d2))
    ref2 = _reference(T2, d2, dtype=x2.dtype)
    assert pos2.shape == (1, 2 * T2 - 1, d2), pos2.shape
    assert jnp.allclose(pos2, ref2, atol=1e-5, rtol=1e-5), (
        float(jnp.max(jnp.abs(pos2 - ref2)))
    )

    print("KERNEL_OK")
</pallas_src>

<mosaic_0001>
module attributes {stable_mosaic.version = 11 : i64} {
  func.func @_rel_pos_kernel(%arg0: i32, %arg1: memref<1x1x32xf32, #tpu.memory_space<vmem>>, %arg2: memref<1x1x32xf32, #tpu.memory_space<vmem>>, %arg3: memref<16x32xf32, #tpu.memory_space<vmem>>, %arg4: memref<16x32xf32, #tpu.memory_space<vmem>>, %arg5: memref<16x32xf32, #tpu.memory_space<vmem>>) attributes {dimension_semantics = [#tpu.dimension_semantics<parallel>], iteration_bounds = array<i64: 1>, scalar_prefetch = 0 : i64, scratch_operands = 0 : i64, tpu.core_type = #tpu.core_type<tc>, window_params = [{transform_indices = @transform_0, window_bounds = array<i64: 1, 1, 32>}, {transform_indices = @transform_1, window_bounds = array<i64: 1, 1, 32>}, {pipeline_mode = #tpu.pipeline_mode<synchronous>, transform_indices = @transform_2, window_bounds = array<i64: 16, 32>}, {pipeline_mode = #tpu.pipeline_mode<synchronous>, transform_indices = @transform_3, window_bounds = array<i64: 16, 32>}, {transform_indices = @transform_4, window_bounds = array<i64: 16, 32>}]} {
    %c0 = arith.constant 0 : index
    %c0_0 = arith.constant 0 : index
    %0 = vector.load %arg3[%c0, %c0_0] : memref<16x32xf32, #tpu.memory_space<vmem>>, vector<16x32xf32>
    %c0_1 = arith.constant 0 : index
    %c0_2 = arith.constant 0 : index
    %1 = vector.load %arg4[%c0_1, %c0_2] : memref<16x32xf32, #tpu.memory_space<vmem>>, vector<16x32xf32>
    %c0_3 = arith.constant 0 : index
    %c0_4 = arith.constant 0 : index
    %c0_5 = arith.constant 0 : index
    %2 = vector.load %arg1[%c0_3, %c0_4, %c0_5] : memref<1x1x32xf32, #tpu.memory_space<vmem>>, vector<1x1x32xf32>
    %3 = vector.shape_cast %2 : vector<1x1x32xf32> to vector<1x32xf32>
    %c0_6 = arith.constant 0 : index
    %c0_7 = arith.constant 0 : index
    %c0_8 = arith.constant 0 : index
    %4 = vector.load %arg2[%c0_6, %c0_7, %c0_8] : memref<1x1x32xf32, #tpu.memory_space<vmem>>, vector<1x1x32xf32>
    %5 = vector.shape_cast %4 : vector<1x1x32xf32> to vector<1x32xf32>
    %6 = vector.broadcast %3 : vector<1x32xf32> to vector<16x32xf32>
    %7 = arith.mulf %6, %0 : vector<16x32xf32>
    %8 = vector.broadcast %5 : vector<1x32xf32> to vector<16x32xf32>
    %9 = arith.mulf %8, %1 : vector<16x32xf32>
    %10 = arith.addf %7, %9 : vector<16x32xf32>
    %c0_9 = arith.constant 0 : index
    %c0_10 = arith.constant 0 : index
    %11 = vector.load %arg5[%c0_9, %c0_10] : memref<16x32xf32, #tpu.memory_space<vmem>>, vector<16x32xf32>
    tpu.vector_store %arg5[%c0_9, %c0_10], %10 {strides = array<i32>} : memref<16x32xf32, #tpu.memory_space<vmem>>, vector<16x32xf32>,
    return
  }
  func.func @transform_0(%arg0: i32) -> (i32, i32, i32) {
    %c0_i32 = arith.constant 0 : i32
    %c0_i32_0 = arith.constant 0 : i32
    %c0_i32_1 = arith.constant 0 : i32
    return %arg0, %c0_i32, %c0_i32_0 : i32, i32, i32
  }
  func.func @transform_1(%arg0: i32) -> (i32, i32, i32) {
    %c0_i32 = arith.constant 0 : i32
    %c0_i32_0 = arith.constant 0 : i32
    %c0_i32_1 = arith.constant 0 : i32
    return %arg0, %c0_i32, %c0_i32_0 : i32, i32, i32
  }
  func.func @transform_2(%arg0: i32) -> (i32, i32) {
    %c0_i32 = arith.constant 0 : i32
    %c0_i32_0 = arith.constant 0 : i32
    %c0_i32_1 = arith.constant 0 : i32
    return %c0_i32, %c0_i32_0 : i32, i32
  }
  func.func @transform_3(%arg0: i32) -> (i32, i32) {
    %c0_i32 = arith.constant 0 : i32
    %c0_i32_0 = arith.constant 0 : i32
    %c0_i32_1 = arith.constant 0 : i32
    return %c0_i32, %c0_i32_0 : i32, i32
  }
  func.func @transform_4(%arg0: i32) -> (i32, i32) {
    %c0_i32 = arith.constant 0 : i32
    %c0_i32_0 = arith.constant 0 : i32
    return %arg0, %c0_i32 : i32, i32
  }
}

</mosaic_0001>

<llo_original>
// kernel: tpu_custom_call.1
$region0: #{tpu_custom_call.1}
  #allocation0 [shape = 'u32[]', space=smem, size = 0x4, offset = 0x4, fixed_abs, tag = 'smem constant byte address 0x4 - core index']
  #allocation1 [shape = 'u32[72,128]{1,0:T(1,128)}', space=vmem, size = 0x9000, scoped, tag = 'internal scratch']
  %s0 = inlined_call_operand.hbm [shape: f32[1,1,32], index: 0, kind: input, shape index: {}]
  %s1 = inlined_call_operand.hbm [shape: f32[1,1,32], index: 1, kind: input, shape index: {}]
  %s2 = inlined_call_operand.hbm [shape: f32[16,32], index: 2, kind: input, shape index: {}]
  %s3 = inlined_call_operand.hbm [shape: f32[16,32], index: 3, kind: input, shape index: {}]
  %s4 = inlined_call_operand.hbm [shape: f32[15,32], index: 4, kind: output, shape index: {}]
  %s5 = sld [smem:[#allocation0]]
  $region42: #{tpu_custom_call.1} parent=0
    _
  %s7 = ssub.s32 1, %s5
  %s8 = scalar_select 0, %s7, %s5
  $region1: #{tpu_custom_call.1} parent=0
    #allocation2 [shape = 'u8[512]{0}', space=vmem, size = 0x400, scoped, tag = 'input window, operand 0, single buffered']
    #allocation3 [shape = 's32[1]{0}', space=sflag, size = 0x4, scoped, tag = 'scoped memory for tpu_custom_call.1']
    #allocation4 [shape = 's32[1]{0}', space=sflag, size = 0x4, scoped, tag = 'scoped memory for tpu_custom_call.1']
    #allocation5 [shape = 'u8[512]{0}', space=vmem, size = 0x400, scoped, tag = 'input window, operand 1, single buffered']
    #allocation6 [shape = 's32[1]{0}', space=sflag, size = 0x4, scoped, tag = 'scoped memory for tpu_custom_call.1']
    #allocation7 [shape = 'u8[8192]{0}', space=vmem, size = 0x2000, scoped, tag = 'input window, operand 2, single buffered']
    #allocation8 [shape = 'u8[8192]{0}', space=vmem, size = 0x2000, scoped, tag = 'input window, operand 3, single buffered']
    #allocation9 [shape = 's32[1]{0}', space=sflag, size = 0x4, scoped, tag = 'scoped memory for tpu_custom_call.1']
    #allocation10 [shape = 'u8[8192]{0}', space=vmem, size = 0x2000, scoped, tag = 'output window, operand 0, single buffered']
    %9 = vsyncpa [#allocation3], 0
    %10 = vsyncpa [#allocation6], 0
    %11 = vsyncpa [#allocation9], 0
    %12 = vsyncpa [#allocation4], 0
    // Predicated region
    $region2: #{tpu_custom_call.1} parent=1 // pred_check
      _
    $region3: #{tpu_custom_call.1} parent=1 // pred_check_branch
      %14 = sbr.rel (0) target = $region5
    $region4: #{tpu_custom_call.1} parent=1 // pred_region
      %16 = vsyncadd [#allocation3], 0
      %s18 = sshll.u32 %s0, 4
      %s19 = int_to_ptr.hbm [resolvable:$true] %s18
      %s20 = sshll.u32 [#allocation2], 4
      %s21 = int_to_ptr.vmem [resolvable:$true] %s20
      %23 = dma.hbm_to_vmem [thread:$0]  %s19, 16, %s21, [#allocation3]
    $region5: #{tpu_custom_call.1} parent=1 // pred_fallthru
      _
    // Predicated region
    $region6: #{tpu_custom_call.1} parent=1 // pred_check
      _
    $region7: #{tpu_custom_call.1} parent=1 // pred_check_branch
      %25 = sbr.rel (0) target = $region9
    $region8: #{tpu_custom_call.1} parent=1 // pred_region
      %27 = vsyncadd [#allocation6], 0
      %s29 = sshll.u32 %s1, 4
      %s30 = int_to_ptr.hbm [resolvable:$true] %s29
      %s31 = sshll.u32 [#allocation5], 4
      %s32 = int_to_ptr.vmem [resolvable:$true] %s31
      %34 = dma.hbm_to_vmem [thread:$0]  %s30, 16, %s32, [#allocation6]
    $region9: #{tpu_custom_call.1} parent=1 // pred_fallthru
      _
    // Predicated region
    $region10: #{tpu_custom_call.1} parent=1 // pred_check
      _
    $region11: #{tpu_custom_call.1} parent=1 // pred_check_branch
      %36 = sbr.rel (0) target = $region13
    $region12: #{tpu_custom_call.1} parent=1 // pred_region
      %38 = vsyncadd [#allocation6], 0
      %s39 = sshll.u32 %s2, 4
      %s40 = int_to_ptr.hbm [resolvable:$true] %s39
      %s41 = sshll.u32 [#allocation7], 4
      %s42 = int_to_ptr.vmem [resolvable:$true] %s41
      %47 = dma.hbm_to_vmem [thread:$0]  %s40, 256, %s42, [#allocation6], 128, 128, 8
    $region13: #{tpu_custom_call.1} parent=1 // pred_fallthru
      _
    // Predicated region
    $region14: #{tpu_custom_call.1} parent=1 // pred_check
      _
    $region15: #{tpu_custom_call.1} parent=1 // pred_check_branch
      %49 = sbr.rel (0) target = $region17
    $region16: #{tpu_custom_call.1} parent=1 // pred_region
      %51 = vsyncadd [#allocation9], 0
      %s52 = sshll.u32 %s3, 4
      %s53 = int_to_ptr.hbm [resolvable:$true] %s52
      %s54 = sshll.u32 [#allocation8], 4
      %s55 = int_to_ptr.vmem [resolvable:$true] %s54
      %60 = dma.hbm_to_vmem [thread:$0]  %s53, 256, %s55, [#allocation9], 128, 128, 8
    $region17: #{tpu_custom_call.1} parent=1 // pred_fallthru
      _
    // Predicated region
    $region18: #{tpu_custom_call.1} parent=1 // pred_check
      _
    $region19: #{tpu_custom_call.1} parent=1 // pred_check_branch
      %62 = sbr.rel (0) target = $region21
    $region20: #{tpu_custom_call.1} parent=1 // pred_region
      %64 = dma.done [#allocation3], 16
    $region21: #{tpu_custom_call.1} parent=1 // pred_fallthru
      _
    // Predicated region
    $region22: #{tpu_custom_call.1} parent=1 // pred_check
      _
    $region23: #{tpu_custom_call.1} parent=1 // pred_check_branch
      %66 = sbr.rel (0) target = $region25
    $region24: #{tpu_custom_call.1} parent=1 // pred_region
      %68 = dma.done [#allocation6], 16
    $region25: #{tpu_custom_call.1} parent=1 // pred_fallthru
      _
    // Predicated region
    $region26: #{tpu_custom_call.1} parent=1 // pred_check
      _
    $region27: #{tpu_custom_call.1} parent=1 // pred_check_branch
      %70 = sbr.rel (0) target = $region29
    $region28: #{tpu_custom_call.1} parent=1 // pred_region
      %72 = dma.done [#allocation6], 256
    $region29: #{tpu_custom_call.1} parent=1 // pred_fallthru
      _
    // Predicated region
    $region30: #{tpu_custom_call.1} parent=1 // pred_check
      _
    $region31: #{tpu_custom_call.1} parent=1 // pred_check_branch
      %74 = sbr.rel (0) target = $region33
    $region32: #{tpu_custom_call.1} parent=1 // pred_region
      %76 = dma.done [#allocation9], 256
    $region33: #{tpu_custom_call.1} parent=1 // pred_fallthru
      _
    %v77 = vld [vmem:[#allocation7] sm:$0xff]
    %v78 = vld [vmem:[#allocation7 + $0x8] sm:$0xff]
    %v79 = vld [vmem:[#allocation8] sm:$0xff]
    %v80 = vld [vmem:[#allocation8 + $0x8] sm:$0xff]
    %v81 = vld [vmem:[#allocation2] sm:$0x1]
    %v82 = vld [vmem:[#allocation5] sm:$0x1]
    %v84 = vperm.slane %v81, 0
    %v86 = vmul.f32 %v84, %v77
    %v87 = vmul.f32 %v84, %v78
    %v89 = vperm.slane %v82, 0
    %v91 = vmul.f32 %v89, %v79
    %v92 = vmul.f32 %v89, %v80
    %v93 = vadd.f32 %v86, %v91
    %v94 = vadd.f32 %v87, %v92
    %vm95 = vcmask 261120
    %96 = vst.msk [vmem:[#allocation10] sm:$0xff] %vm95, %v93
    %97 = vst.msk [vmem:[#allocation10 + $0x8] sm:$0xff] %vm95, %v94
    // Predicated region
    $region34: #{tpu_custom_call.1} parent=1 // pred_check
      _
    $region35: #{tpu_custom_call.1} parent=1 // pred_check_branch
      %99 = sbr.rel (0) target = $region37
    $region36: #{tpu_custom_call.1} parent=1 // pred_region
      %101 = vsyncadd [#allocation4], 0
      %s102 = sshll.u32 [#allocation10], 4
      %s103 = int_to_ptr.vmem [resolvable:$true] %s102
      %s104 = sshll.u32 %s4, 4
      %s105 = int_to_ptr.hbm [resolvable:$true] %s104
      %110 = dma.vmem_to_hbm [thread:$0]  %s103, 256, %s105, [#allocation4], 128, 128, 8
    $region37: #{tpu_custom_call.1} parent=1 // pred_fallthru
      _
    // Predicated region
    $region38: #{tpu_custom_call.1} parent=1 // pred_check
      _
    $region39: #{tpu_custom_call.1} parent=1 // pred_check_branch
      %112 = sbr.rel (0) target = $region41
    $region40: #{tpu_custom_call.1} parent=1 // pred_region
      %114 = dma.done [#allocation4], 256
    $region41: #{tpu_custom_call.1} parent=1 // pred_fallthru
      _
    %115 = vsyncpa [#allocation3], 1
    %116 = vsyncpa [#allocation6], 1
    %117 = vsyncpa [#allocation9], 1
    %118 = vsyncpa [#allocation4], 1

</llo_original>
